<compile_context>
chip_gen: v7x
topology: tpu7x:2x2x1
jax: 0.10.0
libtpu: 0.0.40
codegen_flags: <defaults>
</compile_context>

<pallas_src>
import functools

import jax
import jax.numpy as jnp
from jax.experimental import pallas as pl
from jax.experimental.pallas import tpu as pltpu


def _cond_entropy_kernel(x_ref, w_ref, o_ref, *, k, c, bp, tbp, steps, nt, need_mask):
    p = pl.program_id(0)           # core-split (parallel) axis
    i = pl.program_id(1)           # reduction (arbitrary) axis
    g = p * steps + i              # global packed-tile index

    @pl.when(i == 0)
    def _init():
        o_ref[...] = jnp.zeros_like(o_ref)

    x = x_ref[...].astype(jnp.float32)      # (tbp, k*c)
    w = w_ref[...].astype(jnp.float32)      # (tbp, k*c) or (1, k*c)

    # Segment j of a packed row is original row (packed_row * k + j).
    col = None
    for j in range(k):
        xs = x[:, j * c:(j + 1) * c]
        ws = w[:, j * c:(j + 1) * c]
        m = jnp.max(xs, axis=1, keepdims=True)
        z = xs - m                                     # z <= 0 -> exp(z) <= 1
        ez = jnp.exp(z)
        denom = jnp.sum(ez, axis=1, keepdims=True)     # >= 1
        ezw = ez * ws
        s_ew = jnp.sum(ezw, axis=1, keepdims=True)
        s_ewz = jnp.sum(ezw * z, axis=1, keepdims=True)
        pr = (s_ewz - jnp.log(denom) * s_ew) / denom   # (tbp, 1)
        col = pr if col is None else col + pr

    if need_mask:
        # Only the last *global* tile can contain padded rows; every other
        # step skips the iota/compare/select entirely.
        @pl.when(g != nt - 1)
        def _acc_full():
            o_ref[...] = o_ref[...] + jnp.sum(col)

        @pl.when(g == nt - 1)
        def _acc_masked():
            rows = jax.lax.broadcasted_iota(jnp.int32, col.shape, 0) + g * tbp
            # Select (not multiply): NaN/Inf garbage in padded rows is dropped.
            masked = jnp.where(rows < bp, col, 0.0)
            o_ref[...] = o_ref[...] + jnp.sum(masked)
    else:
        o_ref[...] = o_ref[...] + jnp.sum(col)


def _make_spec(shape, index_map, bufs=None):
    """BlockSpec with optional N-deep buffering; falls back gracefully."""
    if bufs is not None:
        try:
            return pl.BlockSpec(shape, index_map, pipeline_mode=pl.Buffered(bufs))
        except (TypeError, AttributeError):
            pass
    return pl.BlockSpec(shape, index_map)


def conditional_entropy_loss(x, weight, *, block_rows=None):
    """x: (B, C) logits; weight: (B, C), (1, C) or (C,). Returns scalar f32."""
    B, C = x.shape
    w = jnp.asarray(weight)
    if w.ndim == 1:
        w = w.reshape(1, C)
    assert w.shape in ((1, C), (B, C)), w.shape
    w_per_row = (w.shape[0] == B) and B > 1

    # ---- Lane packing for small class counts: view (B, C) as (B/k, k*C). ----
    k = 1
    if C < 128:
        kmax = max(1, 128 // C)
        for cand in range(min(kmax, B), 0, -1):
            if B % cand == 0:
                k = cand
                break
    Bp, Cp = B // k, C * k
    xp = x.reshape(Bp, Cp) if k > 1 else x
    if w_per_row:
        wp = w.reshape(Bp, Cp) if k > 1 else w
    else:
        wp = jnp.tile(w, (1, k)) if k > 1 else w       # (1, Cp), VMEM-resident

    x_isz = jnp.dtype(xp.dtype).itemsize
    w_isz = jnp.dtype(wp.dtype).itemsize

    # ---- Generation-aware tile budget (pure HBM-streaming kernel). ----
    try:
        info = pltpu.get_tpu_info()
        vmem_cap = int(getattr(info, "vmem_capacity_bytes", 0) or 0)
    except Exception:
        vmem_cap = 0
    if vmem_cap >= 96 * 1024 * 1024:                   # v5e / v6e: 128 MiB VMEM
        budget, vmem_limit = 28 * 1024 * 1024, 64 * 1024 * 1024
    else:                                              # v7x (or unknown): 64 MiB VMEM
        budget, vmem_limit = 20 * 1024 * 1024, 48 * 1024 * 1024

    X_BUFS = 3                                         # triple-buffered logits
    W_BUFS = 3 if w_per_row else 0                     # broadcast weight stays resident
    if block_rows is None:
        per_row_bytes = Cp * (X_BUFS * x_isz + W_BUFS * w_isz)
        tbp = max(8, budget // per_row_bytes)
    else:
        tbp = int(block_rows)
    if tbp >= Bp:
        tbp = Bp
    else:
        tbp = max(8, (tbp // 8) * 8)
        if tbp >= Bp:
            tbp = Bp

    # ---- Split the tile sequence across 2 TensorCores (v7x); no-op on 1-TC. ----
    nt = -(-Bp // tbp)
    if nt >= 3 and nt % 2 == 1:
        cand = -(-Bp // (nt + 1))
        cand = max(8, ((cand + 7) // 8) * 8)
        if cand < Bp:
            nt_c = -(-Bp // cand)
            if nt_c >= 2 and nt_c % 2 == 0:
                tbp, nt = cand, nt_c
    nc = 2 if (nt >= 2 and nt % 2 == 0) else 1
    steps = nt // nc
    need_mask = (Bp % tbp) != 0

    bufs = 3 if steps >= 4 else None
    x_spec = _make_spec((tbp, Cp), lambda p, i: (p * steps + i, 0), bufs=bufs)
    if w_per_row:
        w_spec = _make_spec((tbp, Cp), lambda p, i: (p * steps + i, 0), bufs=bufs)
    else:
        w_spec = pl.BlockSpec((1, Cp), lambda p, i: (0, 0))
    out_spec = pl.BlockSpec((1, 8, 128), lambda p, i: (p, 0, 0))

    kernel = functools.partial(
        _cond_entropy_kernel,
        k=k, c=C, bp=Bp, tbp=tbp, steps=steps, nt=nt, need_mask=need_mask,
    )

    bytes_accessed = int(xp.size) * x_isz + int(wp.size) * w_isz + nc * 8 * 128 * 4
    cost = pl.CostEstimate(
        flops=7 * B * C,
        transcendentals=B * C + 2 * B,
        bytes_accessed=bytes_accessed,
    )

    out = pl.pallas_call(
        kernel,
        out_shape=jax.ShapeDtypeStruct((nc, 8, 128), jnp.float32),
        grid=(nc, steps),
        in_specs=[x_spec, w_spec],
        out_specs=out_spec,
        compiler_params=pltpu.CompilerParams(
            dimension_semantics=("parallel", "arbitrary"),
            vmem_limit_bytes=vmem_limit,
        ),
        cost_estimate=cost,
    )(xp, wp)

    return out[:, 0, 0].sum() * jnp.float32(-1.0 / B)


def _reference(x, weight):
    x = jnp.asarray(x).astype(jnp.float32)
    weight = jnp.asarray(weight).astype(jnp.float32)
    sm = jax.nn.softmax(x, axis=1)
    lsm = jax.nn.log_softmax(x, axis=1)
    loss = (sm * lsm * weight).sum(axis=1)
    return -1.0 * loss.mean(axis=0)


if __name__ == "__main__":
    key = jax.random.PRNGKey(0)
    keys = jax.random.split(key, 8)

    # 1) Small module-consistent case: batch=8, classes=32 (lane-packed k=4).
    B, C = 8, 32
    x = jax.random.normal(keys[0], (B, C), dtype=jnp.float32)
    w = jax.random.uniform(keys[1], (B, C), dtype=jnp.float32)
    loss = conditional_entropy_loss(x, w)
    jax.block_until_ready(loss)
    assert jnp.allclose(loss, _reference(x, w), rtol=1e-5, atol=1e-5)

    # 2) Multi-tile + dual-core split + partial-last-tile masking (200 % 64 != 0).
    B2, C2 = 200, 128
    x2 = jax.random.normal(keys[2], (B2, C2), dtype=jnp.float32)
    w2 = jax.random.uniform(keys[3], (B2, C2), dtype=jnp.float32)
    loss2 = conditional_entropy_loss(x2, w2, block_rows=64)
    jax.block_until_ready(loss2)
    assert jnp.allclose(loss2, _reference(x2, w2), rtol=1e-5, atol=1e-5)

    # 3) Broadcast (1, C) weight stays VMEM-resident across grid steps.
    w3 = jax.random.uniform(keys[4], (1, C2), dtype=jnp.float32)
    loss3 = conditional_entropy_loss(x2, w3, block_rows=64)
    jax.block_until_ready(loss3)
    assert jnp.allclose(loss3, _reference(x2, w3), rtol=1e-5, atol=1e-5)

    # 4) Small-C lane packing + multi-tile + dual-core split, 1-D class weights.
    B4, C4 = 256, 32
    x4 = jax.random.normal(keys[5], (B4, C4), dtype=jnp.float32)
    w4 = jax.random.uniform(keys[6], (C4,), dtype=jnp.float32)
    loss4 = conditional_entropy_loss(x4, w4, block_rows=16)
    jax.block_until_ready(loss4)
    assert jnp.allclose(loss4, _reference(x4, w4), rtol=1e-5, atol=1e-5)

    # 5) bf16 pass-through (halves HBM bytes); kernel math stays in f32.
    x5 = x4.astype(jnp.bfloat16)
    w5 = jax.random.uniform(keys[7], (B4, C4), dtype=jnp.bfloat16)
    loss5 = conditional_entropy_loss(x5, w5)
    jax.block_until_ready(loss5)
    assert jnp.allclose(loss5, _reference(x5, w5), rtol=1e-4, atol=1e-4)

    print("KERNEL_OK")
</pallas_src>

<mosaic_0001>
module attributes {stable_mosaic.version = 11 : i64} {
  func.func @_cond_entropy_kernel(%arg0: i32, %arg1: i32, %arg2: memref<2x128xf32, #tpu.memory_space<vmem>>, %arg3: memref<2x128xf32, #tpu.memory_space<vmem>>, %arg4: memref<1x8x128xf32, #tpu.memory_space<vmem>>) attributes {dimension_semantics = [#tpu.dimension_semantics<parallel>, #tpu.dimension_semantics<arbitrary>], iteration_bounds = array<i64: 1, 1>, scalar_prefetch = 0 : i64, scratch_operands = 0 : i64, tpu.core_type = #tpu.core_type<tc>, window_params = [{transform_indices = @transform_0, window_bounds = array<i64: 2, 128>}, {transform_indices = @transform_1, window_bounds = array<i64: 2, 128>}, {transform_indices = @transform_2, window_bounds = array<i64: 1, 8, 128>}]} {
    %c0_i32 = arith.constant 0 : i32
    %0 = arith.cmpi eq, %arg1, %c0_i32 : i32
    %1 = arith.extui %0 : i1 to i32
    %c0_i32_0 = arith.constant 0 : i32
    %2 = arith.cmpi ne, %1, %c0_i32_0 : i32
    scf.if %2 {
      %cst_26 = arith.constant 0.000000e+00 : f32
      %92 = vector.broadcast %cst_26 : f32 to vector<1x8x128xf32>
      %c0_27 = arith.constant 0 : index
      %c0_28 = arith.constant 0 : index
      %c0_29 = arith.constant 0 : index
      %93 = vector.load %arg4[%c0_27, %c0_28, %c0_29] : memref<1x8x128xf32, #tpu.memory_space<vmem>>, vector<1x8x128xf32>
      tpu.vector_store %arg4[%c0_27, %c0_28, %c0_29], %92 {strides = array<i32>} : memref<1x8x128xf32, #tpu.memory_space<vmem>>, vector<1x8x128xf32>,
    } else {
    }
    %c0 = arith.constant 0 : index
    %c0_1 = arith.constant 0 : index
    %3 = vector.load %arg2[%c0, %c0_1] : memref<2x128xf32, #tpu.memory_space<vmem>>, vector<2x128xf32>
    %c0_2 = arith.constant 0 : index
    %c0_3 = arith.constant 0 : index
    %4 = vector.load %arg3[%c0_2, %c0_3] : memref<2x128xf32, #tpu.memory_space<vmem>>, vector<2x128xf32>
    %5 = vector.extract_strided_slice %3 {offsets = [0, 0], sizes = [2, 32], strides = [1, 1]} : vector<2x128xf32> to vector<2x32xf32>
    %6 = vector.extract_strided_slice %4 {offsets = [0, 0], sizes = [2, 32], strides = [1, 1]} : vector<2x128xf32> to vector<2x32xf32>
    %cst = arith.constant dense<0xFF800000> : vector<2xf32>
    %7 = vector.multi_reduction <maximumf>, %5, %cst [1] : vector<2x32xf32> to vector<2xf32>
    %8 = vector.shape_cast %7 : vector<2xf32> to vector<2x1xf32>
    %9 = vector.broadcast %8 : vector<2x1xf32> to vector<2x32xf32>
    %10 = arith.subf %5, %9 : vector<2x32xf32>
    %11 = math.exp %10 : vector<2x32xf32>
    %cst_4 = arith.constant dense<0.000000e+00> : vector<2xf32>
    %12 = vector.multi_reduction <add>, %11, %cst_4 [1] : vector<2x32xf32> to vector<2xf32>
    %13 = vector.shape_cast %12 : vector<2xf32> to vector<2x1xf32>
    %14 = arith.mulf %11, %6 : vector<2x32xf32>
    %cst_5 = arith.constant dense<0.000000e+00> : vector<2xf32>
    %15 = vector.multi_reduction <add>, %14, %cst_5 [1] : vector<2x32xf32> to vector<2xf32>
    %16 = vector.shape_cast %15 : vector<2xf32> to vector<2x1xf32>
    %17 = arith.mulf %14, %10 : vector<2x32xf32>
    %cst_6 = arith.constant dense<0.000000e+00> : vector<2xf32>
    %18 = vector.multi_reduction <add>, %17, %cst_6 [1] : vector<2x32xf32> to vector<2xf32>
    %19 = vector.shape_cast %18 : vector<2xf32> to vector<2x1xf32>
    %20 = math.log %13 : vector<2x1xf32>
    %21 = arith.mulf %20, %16 : vector<2x1xf32>
    %22 = arith.subf %19, %21 : vector<2x1xf32>
    %23 = arith.divf %22, %13 : vector<2x1xf32>
    %24 = vector.extract_strided_slice %3 {offsets = [0, 32], sizes = [2, 32], strides = [1, 1]} : vector<2x128xf32> to vector<2x32xf32>
    %25 = vector.extract_strided_slice %4 {offsets = [0, 32], sizes = [2, 32], strides = [1, 1]} : vector<2x128xf32> to vector<2x32xf32>
    %cst_7 = arith.constant dense<0xFF800000> : vector<2xf32>
    %26 = vector.multi_reduction <maximumf>, %24, %cst_7 [1] : vector<2x32xf32> to vector<2xf32>
    %27 = vector.shape_cast %26 : vector<2xf32> to vector<2x1xf32>
    %28 = vector.broadcast %27 : vector<2x1xf32> to vector<2x32xf32>
    %29 = arith.subf %24, %28 : vector<2x32xf32>
    %30 = math.exp %29 : vector<2x32xf32>
    %cst_8 = arith.constant dense<0.000000e+00> : vector<2xf32>
    %31 = vector.multi_reduction <add>, %30, %cst_8 [1] : vector<2x32xf32> to vector<2xf32>
    %32 = vector.shape_cast %31 : vector<2xf32> to vector<2x1xf32>
    %33 = arith.mulf %30, %25 : vector<2x32xf32>
    %cst_9 = arith.constant dense<0.000000e+00> : vector<2xf32>
    %34 = vector.multi_reduction <add>, %33, %cst_9 [1] : vector<2x32xf32> to vector<2xf32>
    %35 = vector.shape_cast %34 : vector<2xf32> to vector<2x1xf32>
    %36 = arith.mulf %33, %29 : vector<2x32xf32>
    %cst_10 = arith.constant dense<0.000000e+00> : vector<2xf32>
    %37 = vector.multi_reduction <add>, %36, %cst_10 [1] : vector<2x32xf32> to vector<2xf32>
    %38 = vector.shape_cast %37 : vector<2xf32> to vector<2x1xf32>
    %39 = math.log %32 : vector<2x1xf32>
    %40 = arith.mulf %39, %35 : vector<2x1xf32>
    %41 = arith.subf %38, %40 : vector<2x1xf32>
    %42 = arith.divf %41, %32 : vector<2x1xf32>
    %43 = arith.addf %23, %42 : vector<2x1xf32>
    %44 = vector.extract_strided_slice %3 {offsets = [0, 64], sizes = [2, 32], strides = [1, 1]} : vector<2x128xf32> to vector<2x32xf32>
    %45 = vector.extract_strided_slice %4 {offsets = [0, 64], sizes = [2, 32], strides = [1, 1]} : vector<2x128xf32> to vector<2x32xf32>
    %cst_11 = arith.constant dense<0xFF800000> : vector<2xf32>
    %46 = vector.multi_reduction <maximumf>, %44, %cst_11 [1] : vector<2x32xf32> to vector<2xf32>
    %47 = vector.shape_cast %46 : vector<2xf32> to vector<2x1xf32>
    %48 = vector.broadcast %47 : vector<2x1xf32> to vector<2x32xf32>
    %49 = arith.subf %44, %48 : vector<2x32xf32>
    %50 = math.exp %49 : vector<2x32xf32>
    %cst_12 = arith.constant dense<0.000000e+00> : vector<2xf32>
    %51 = vector.multi_reduction <add>, %50, %cst_12 [1] : vector<2x32xf32> to vector<2xf32>
    %52 = vector.shape_cast %51 : vector<2xf32> to vector<2x1xf32>
    %53 = arith.mulf %50, %45 : vector<2x32xf32>
    %cst_13 = arith.constant dense<0.000000e+00> : vector<2xf32>
    %54 = vector.multi_reduction <add>, %53, %cst_13 [1] : vector<2x32xf32> to vector<2xf32>
    %55 = vector.shape_cast %54 : vector<2xf32> to vector<2x1xf32>
    %56 = arith.mulf %53, %49 : vector<2x32xf32>
    %cst_14 = arith.constant dense<0.000000e+00> : vector<2xf32>
    %57 = vector.multi_reduction <add>, %56, %cst_14 [1] : vector<2x32xf32> to vector<2xf32>
    %58 = vector.shape_cast %57 : vector<2xf32> to vector<2x1xf32>
    %59 = math.log %52 : vector<2x1xf32>
    %60 = arith.mulf %59, %55 : vector<2x1xf32>
    %61 = arith.subf %58, %60 : vector<2x1xf32>
    %62 = arith.divf %61, %52 : vector<2x1xf32>
    %63 = arith.addf %43, %62 : vector<2x1xf32>
    %64 = vector.extract_strided_slice %3 {offsets = [0, 96], sizes = [2, 32], strides = [1, 1]} : vector<2x128xf32> to vector<2x32xf32>
    %65 = vector.extract_strided_slice %4 {offsets = [0, 96], sizes = [2, 32], strides = [1, 1]} : vector<2x128xf32> to vector<2x32xf32>
    %cst_15 = arith.constant dense<0xFF800000> : vector<2xf32>
    %66 = vector.multi_reduction <maximumf>, %64, %cst_15 [1] : vector<2x32xf32> to vector<2xf32>
    %67 = vector.shape_cast %66 : vector<2xf32> to vector<2x1xf32>
    %68 = vector.broadcast %67 : vector<2x1xf32> to vector<2x32xf32>
    %69 = arith.subf %64, %68 : vector<2x32xf32>
    %70 = math.exp %69 : vector<2x32xf32>
    %cst_16 = arith.constant dense<0.000000e+00> : vector<2xf32>
    %71 = vector.multi_reduction <add>, %70, %cst_16 [1] : vector<2x32xf32> to vector<2xf32>
    %72 = vector.shape_cast %71 : vector<2xf32> to vector<2x1xf32>
    %73 = arith.mulf %70, %65 : vector<2x32xf32>
    %cst_17 = arith.constant dense<0.000000e+00> : vector<2xf32>
    %74 = vector.multi_reduction <add>, %73, %cst_17 [1] : vector<2x32xf32> to vector<2xf32>
    %75 = vector.shape_cast %74 : vector<2xf32> to vector<2x1xf32>
    %76 = arith.mulf %73, %69 : vector<2x32xf32>
    %cst_18 = arith.constant dense<0.000000e+00> : vector<2xf32>
    %77 = vector.multi_reduction <add>, %76, %cst_18 [1] : vector<2x32xf32> to vector<2xf32>
    %78 = vector.shape_cast %77 : vector<2xf32> to vector<2x1xf32>
    %79 = math.log %72 : vector<2x1xf32>
    %80 = arith.mulf %79, %75 : vector<2x1xf32>
    %81 = arith.subf %78, %80 : vector<2x1xf32>
    %82 = arith.divf %81, %72 : vector<2x1xf32>
    %83 = arith.addf %63, %82 : vector<2x1xf32>
    %c0_19 = arith.constant 0 : index
    %c0_20 = arith.constant 0 : index
    %c0_21 = arith.constant 0 : index
    %84 = vector.load %arg4[%c0_19, %c0_20, %c0_21] : memref<1x8x128xf32, #tpu.memory_space<vmem>>, vector<1x8x128xf32>
    %85 = vector.shape_cast %83 : vector<2x1xf32> to vector<1x2x1xf32>
    %cst_22 = arith.constant dense<0.000000e+00> : vector<1xf32>
    %86 = vector.multi_reduction <add>, %85, %cst_22 [1, 2] : vector<1x2x1xf32> to vector<1xf32>
    %87 = vector.shape_cast %86 : vector<1xf32> to vector<1x1x1xf32>
    %88 = vector.extract %87[0, 0, 0] : f32 from vector<1x1x1xf32>
    %89 = vector.broadcast %88 : f32 to vector<1x8x128xf32>
    %90 = arith.addf %84, %89 : vector<1x8x128xf32>
    %c0_23 = arith.constant 0 : index
    %c0_24 = arith.constant 0 : index
    %c0_25 = arith.constant 0 : index
    %91 = vector.load %arg4[%c0_23, %c0_24, %c0_25] : memref<1x8x128xf32, #tpu.memory_space<vmem>>, vector<1x8x128xf32>
    tpu.vector_store %arg4[%c0_23, %c0_24, %c0_25], %90 {strides = array<i32>} : memref<1x8x128xf32, #tpu.memory_space<vmem>>, vector<1x8x128xf32>,
    return
  }
  func.func @transform_0(%arg0: i32, %arg1: i32) -> (i32, i32) {
    %c1_i32 = arith.constant 1 : i32
    %0 = arith.muli %arg0, %c1_i32 : i32
    %1 = arith.addi %0, %arg1 : i32
    %c0_i32 = arith.constant 0 : i32
    %c0_i32_0 = arith.constant 0 : i32
    return %1, %c0_i32 : i32, i32
  }
  func.func @transform_1(%arg0: i32, %arg1: i32) -> (i32, i32) {
    %c1_i32 = arith.constant 1 : i32
    %0 = arith.muli %arg0, %c1_i32 : i32
    %1 = arith.addi %0, %arg1 : i32
    %c0_i32 = arith.constant 0 : i32
    %c0_i32_0 = arith.constant 0 : i32
    return %1, %c0_i32 : i32, i32
  }
  func.func @transform_2(%arg0: i32, %arg1: i32) -> (i32, i32, i32) {
    %c0_i32 = arith.constant 0 : i32
    %c0_i32_0 = arith.constant 0 : i32
    %c0_i32_1 = arith.constant 0 : i32
    return %arg0, %c0_i32, %c0_i32_0 : i32, i32, i32
  }
}

</mosaic_0001>

<llo_original>
// kernel: tpu_custom_call.1
$region0: #{tpu_custom_call.1}
  #allocation0 [shape = 'u32[]', space=smem, size = 0x4, offset = 0x4, fixed_abs, tag = 'smem constant byte address 0x4 - core index']
  #allocation1 [shape = 'u32[144,128]{1,0:T(1,128)}', space=vmem, size = 0x12000, scoped, tag = 'internal scratch']
  %s0 = inlined_call_operand.hbm [shape: f32[2,128], index: 0, kind: input, shape index: {}]
  %s1 = inlined_call_operand.vmem [shape: f32[2,128], index: 1, kind: input, shape index: {}]
  %s2 = inlined_call_operand.hbm [shape: f32[1,8,128], index: 2, kind: output, shape index: {}]
  %s3 = sld [smem:[#allocation0]]
  $region26: #{tpu_custom_call.1} parent=0
    _
  %s5 = ssub.s32 1, %s3
  %s6 = scalar_select 0, %s5, %s3
  $region1: #{tpu_custom_call.1} parent=0
    #allocation2 [shape = 'u8[1024]{0}', space=vmem, size = 0x400, scoped, tag = 'input window, operand 0, single buffered']
    #allocation3 [shape = 's32[1]{0}', space=sflag, size = 0x4, scoped, tag = 'scoped memory for tpu_custom_call.1']
    #allocation4 [shape = 's32[1]{0}', space=sflag, size = 0x4, scoped, tag = 'scoped memory for tpu_custom_call.1']
    #allocation5 [shape = 'u8[4096]{0}', space=vmem, size = 0x1000, scoped, tag = 'output window, operand 0, single buffered']
    %7 = vsyncpa [#allocation3], 0
    %8 = vsyncpa [#allocation4], 0
    // Predicated region
    $region2: #{tpu_custom_call.1} parent=1 // pred_check
      _
    $region3: #{tpu_custom_call.1} parent=1 // pred_check_branch
      %10 = sbr.rel (0) target = $region5
    $region4: #{tpu_custom_call.1} parent=1 // pred_region
      %s11 = sadd.s32 0, 0
      %s13 = ssub.s32 32, 32
      %14 = vsyncadd [#allocation3], %s13
      %s15 = smul.addr %s11, 32
      %s16 = scalar_lea.hbm %s0, %s15
      %s18 = sshll.u32 [#allocation2], 4
      %s19 = int_to_ptr.vmem [resolvable:$true] %s18
      %21 = dma.hbm_to_vmem [thread:$0]  %s16, 32, %s19, [#allocation3]
    $region5: #{tpu_custom_call.1} parent=1 // pred_fallthru
      _
    // Predicated region
    $region6: #{tpu_custom_call.1} parent=1 // pred_check
      _
    $region7: #{tpu_custom_call.1} parent=1 // pred_check_branch
      %23 = sbr.rel (0) target = $region9
    $region8: #{tpu_custom_call.1} parent=1 // pred_region
      %s24 = sadd.s32 0, 0
      %p25 = scmp.lt.s32.totalorder %s24, 0
      %s26 = scalar_select %p25, %s24, 0
      %s27 = smul.addr %s26, 2
      %s28 = scalar_lea.vmem %s1, %s27
      %s29 = sadd.s32 0, 0
    $region9: #{tpu_custom_call.1} parent=1 // pred_fallthru
      _
    // Predicated region
    $region10: #{tpu_custom_call.1} parent=1 // pred_check
      _
    $region11: #{tpu_custom_call.1} parent=1 // pred_check_branch
      %31 = sbr.rel (0) target = $region13
    $region12: #{tpu_custom_call.1} parent=1 // pred_region
      %32 = dma.done [#allocation3], 32
    $region13: #{tpu_custom_call.1} parent=1 // pred_fallthru
      _
    %s33 = sadd.s32 0, 0
    %p34 = scmp.lt.s32.totalorder %s33, 0
    %s35 = scalar_select %p34, %s33, 0
    %s36 = smul.addr %s35, 2
    %s37 = scalar_lea.vmem %s1, %s36
    %s38 = sadd.s32 0, 0
    %s39 = sadd.s32 0, 0
    %p40 = scmp.lt.s32.totalorder %s39, 0
    %s41 = scalar_select %p40, %s39, 0
    %s42 = smul.addr %s41, 2
    %s43 = scalar_lea.vmem %s1, %s42
    %s44 = sadd.s32 0, 0
    %p45 = scmp.eq.s32.totalorder 0, 0
    // Predicated region
    $region14: #{tpu_custom_call.1} parent=1 // pred_check
      %p46 = pneg %p45
    $region15: #{tpu_custom_call.1} parent=1 // pred_check_branch
      %48 = sbr.rel (%p46) target = $region17
    $region16: #{tpu_custom_call.1} parent=1 // pred_region
      %49 = vst [vmem:[#allocation5] sm:$0xff] 0.0
    $region17: #{tpu_custom_call.1} parent=1 // pred_fallthru
      _
    %v50 = vld [vmem:[#allocation2] sm:$0x3]
    %v51 = vld [vmem:[%s43] sm:$0x3]
    %vm52 = vcmask 254976
    %v53 = vsel %vm52, %v50, -inf
    %54 = vmax.xlane.f32.xlu0 %v53
    %v55 = vpop.xlane.xlu0 %54
    %v56 = vsub.f32 %v50, %v55
    %v57 = vmul.f32 %v56, 1.442695
    %v58 = vpow.pop %v57
    %v59 = vsel %vm52, %v58, 0.0
    %60 = vadd.xlane.f32.xlu0 %v59
    %v61 = vpop.xlane.xlu0 %60
    %v62 = vmul.f32 %v58, %v51
    %v63 = vsel %vm52, %v62, 0.0
    %64 = vadd.xlane.f32.xlu0 %v63
    %v65 = vpop.xlane.xlu0 %64
    %v66 = vmul.f32 %v62, %v56
    %v67 = vsel %vm52, %v66, 0.0
    %68 = vadd.xlane.f32.xlu0 %v67
    %v69 = vpop.xlane.xlu0 %68
    %v70 = vlog2.pop %v61
    %v71 = vmul.f32 %v70, 0.6931472
    %v72 = vmul.f32 %v71, %v65
    %v73 = vsub.f32 %v69, %v72
    %v74 = vrcp.pop %v61
    %v75 = vmul.f32 %v73, %v74
    %vm76 = vcmask 517376
    %v77 = vsel %vm76, %v50, -inf
    %78 = vmax.xlane.f32.xlu0 %v77
    %v79 = vpop.xlane.xlu0 %78
    %v80 = vsub.f32 %v50, %v79
    %v81 = vmul.f32 %v80, 1.442695
    %v82 = vpow.pop %v81
    %84 = vrot.lane.b32.xlu0 %v82, 96
    %v85 = vpop.permute.xlu0 %84
    %v87 = vsel %vm52, %v85, 0.0
    %88 = vadd.xlane.f32.xlu0 %v87
    %v89 = vpop.xlane.xlu0 %88
    %v90 = vmul.f32 %v82, %v51
    %92 = vrot.lane.b32.xlu0 %v90, 96
    %v93 = vpop.permute.xlu0 %92
    %v95 = vsel %vm52, %v93, 0.0
    %96 = vadd.xlane.f32.xlu0 %v95
    %v97 = vpop.xlane.xlu0 %96
    %v98 = vmul.f32 %v90, %v80
    %100 = vrot.lane.b32.xlu0 %v98, 96
    %v101 = vpop.permute.xlu0 %100
    %v103 = vsel %vm52, %v101, 0.0
    %104 = vadd.xlane.f32.xlu0 %v103
    %v105 = vpop.xlane.xlu0 %104
    %v106 = vlog2.pop %v89
    %v107 = vmul.f32 %v106, 0.6931472
    %v108 = vmul.f32 %v107, %v97
    %v109 = vsub.f32 %v105, %v108
    %v110 = vrcp.pop %v89
    %v111 = vmul.f32 %v109, %v110
    %v112 = vadd.f32 %v75, %v111
    %vm113 = vcmask 779776
    %v114 = vsel %vm113, %v50, -inf
    %115 = vmax.xlane.f32.xlu0 %v114
    %v116 = vpop.xlane.xlu0 %115
    %v117 = vsub.f32 %v50, %v116
    %v118 = vmul.f32 %v117, 1.442695
    %v119 = vpow.pop %v118
    %121 = vrot.lane.b32.xlu0 %v119, 64
    %v122 = vpop.permute.xlu0 %121
    %v124 = vsel %vm52, %v122, 0.0
    %125 = vadd.xlane.f32.xlu0 %v124
    %v126 = vpop.xlane.xlu0 %125
    %v127 = vmul.f32 %v119, %v51
    %129 = vrot.lane.b32.xlu0 %v127, 64
    %v130 = vpop.permute.xlu0 %129
    %v132 = vsel %vm52, %v130, 0.0
    %133 = vadd.xlane.f32.xlu0 %v132
    %v134 = vpop.xlane.xlu0 %133
    %v135 = vmul.f32 %v127, %v117
    %137 = vrot.lane.b32.xlu0 %v135, 64
    %v138 = vpop.permute.xlu0 %137
    %v140 = vsel %vm52, %v138, 0.0
    %141 = vadd.xlane.f32.xlu0 %v140
    %v142 = vpop.xlane.xlu0 %141
    %v143 = vlog2.pop %v126
    %v144 = vmul.f32 %v143, 0.6931472
    %v145 = vmul.f32 %v144, %v134
    %v146 = vsub.f32 %v142, %v145
    %v147 = vrcp.pop %v126
    %v148 = vmul.f32 %v146, %v147
    %v149 = vadd.f32 %v112, %v148
    %vm150 = vcmask 1042176
    %v151 = vsel %vm150, %v50, -inf
    %152 = vmax.xlane.f32.xlu0 %v151
    %v153 = vpop.xlane.xlu0 %152
    %v154 = vsub.f32 %v50, %v153
    %v155 = vmul.f32 %v154, 1.442695
    %v156 = vpow.pop %v155
    %158 = vrot.lane.b32.xlu0 %v156, 32
    %v159 = vpop.permute.xlu0 %158
    %v161 = vsel %vm52, %v159, 0.0
    %162 = vadd.xlane.f32.xlu0 %v161
    %v163 = vpop.xlane.xlu0 %162
    %v164 = vmul.f32 %v156, %v51
    %166 = vrot.lane.b32.xlu0 %v164, 32
    %v167 = vpop.permute.xlu0 %166
    %v169 = vsel %vm52, %v167, 0.0
    %170 = vadd.xlane.f32.xlu0 %v169
    %v171 = vpop.xlane.xlu0 %170
    %v172 = vmul.f32 %v164, %v154
    %174 = vrot.lane.b32.xlu0 %v172, 32
    %v175 = vpop.permute.xlu0 %174
    %v177 = vsel %vm52, %v175, 0.0
    %178 = vadd.xlane.f32.xlu0 %v177
    %v179 = vpop.xlane.xlu0 %178
    %v180 = vlog2.pop %v163
    %v181 = vmul.f32 %v180, 0.6931472
    %v182 = vmul.f32 %v181, %v171
    %v183 = vsub.f32 %v179, %v182
    %v184 = vrcp.pop %v163
    %v185 = vmul.f32 %v183, %v184
    %v186 = vadd.f32 %v149, %v185
    %v187 = vld [vmem:[#allocation5] sm:$0xff]
    %vm188 = vcmask 1024
    %v189 = vsel %vm188, %v186, 0.0
    %190 = vadd.xlane.f32.xlu0 %v189
    %v191 = vpop.xlane.xlu0 %190
    %v192 = vrot.slane %v191, 4
    %v193 = vadd.f32 %v191, %v192
    %v194 = vrot.slane %v193, 2
    %v195 = vadd.f32 %v193, %v194
    %v196 = vrot.slane %v195, 1
    %v197 = vadd.f32 %v195, %v196
    %s198 = vtos %v197
    %v199 = vstv %s198
    %v200 = vadd.f32 %v187, %v199
    %201 = vst [vmem:[#allocation5] sm:$0xff] %v200
    // Predicated region
    $region18: #{tpu_custom_call.1} parent=1 // pred_check
      _
    $region19: #{tpu_custom_call.1} parent=1 // pred_check_branch
      %203 = sbr.rel (0) target = $region21
    $region20: #{tpu_custom_call.1} parent=1 // pred_region
      %s205 = ssub.s32 128, 128
      %206 = vsyncadd [#allocation4], %s205
      %s208 = sshll.u32 [#allocation5], 4
      %s209 = int_to_ptr.vmem [resolvable:$true] %s208
      %211 = dma.vmem_to_hbm [thread:$0]  %s209, 128, %s2, [#allocation4]
    $region21: #{tpu_custom_call.1} parent=1 // pred_fallthru
      _
    // Predicated region
    $region22: #{tpu_custom_call.1} parent=1 // pred_check
      _
    $region23: #{tpu_custom_call.1} parent=1 // pred_check_branch
      %213 = sbr.rel (0) target = $region25
    $region24: #{tpu_custom_call.1} parent=1 // pred_region
      %214 = dma.done [#allocation4], 128
    $region25: #{tpu_custom_call.1} parent=1 // pred_fallthru
      _
    %215 = vsyncpa [#allocation3], 1
    %216 = vsyncpa [#allocation4], 1

</llo_original>
